<compile_context>
chip_gen: v5e
topology: v5e:2x2
jax: 0.10.0
libtpu: 0.0.40
codegen_flags: <defaults>
</compile_context>

<pallas_src>
import jax
import jax.numpy as jnp
from jax.experimental import pallas as pl
from jax.experimental.pallas import tpu as pltpu

A_PAD = 128          # pad action dim to one full lane width -> unmasked vst
NEG_BIG = -1.0e30    # logit bias for padding lanes: exp(NEG_BIG - m) == 0


def _round_up(n, m):
    return ((n + m - 1) // m) * m


def _fused_net_kernel(x_ref, w_ref, b_ref, out_ref):
    """(TB, S) @ (S, A_PAD) matmul + bias + softmax on one VMEM tile."""
    # Single MXU matmul with f32 accumulation (inputs may be f32 or bf16).
    logits = jnp.dot(x_ref[...], w_ref[...],
                     preferred_element_type=jnp.float32)
    logits = logits + b_ref[...]                     # bias add in f32

    # Numerically stable softmax over the 128-lane padded last axis.
    # Padding lanes carry a -1e30 bias, so they contribute exactly 0.
    m = jnp.max(logits, axis=-1, keepdims=True)
    e = jnp.exp(logits - m)
    denom = jnp.sum(e, axis=-1, keepdims=True)
    # EUP reciprocal instead of a VPU divide (separate issue slot after exp).
    out_ref[...] = e * pl.reciprocal(denom, approx=True)


def fuse_params(params, *, compute_dtype=jnp.float32):
    """Collapse fc1 -> fc2 -> fc3 (no activations) into one padded layer.

    Returns (w_pad (S, A_PAD) compute_dtype, b_pad (1, A_PAD) f32, A).
    Recompute whenever the underlying parameters change (after every
    optimizer step).
    """
    w_eff = params["w1"] @ params["w2"] @ params["w3"]                  # (S, A)
    b_eff = (params["b1"] @ params["w2"] @ params["w3"]
             + params["b2"] @ params["w3"] + params["b3"])              # (1, A)
    S, A = w_eff.shape
    w_pad = jnp.zeros((S, A_PAD), jnp.float32).at[:, :A].set(w_eff)
    b_pad = jnp.full((1, A_PAD), NEG_BIG, jnp.float32).at[:, :A].set(b_eff)
    return w_pad.astype(compute_dtype), b_pad, A


def net_forward(x, fused, *, block_b=1024):
    """Fused MLP + softmax.

    x:      (B, state_size) float32 states (batch as many rollout steps as
            possible per call -- launch overhead dominates tiny batches).
    fused:  output of fuse_params().
    block_b: batch tile (multiple of 16); 1024 keeps double-buffered tiles
             ~1 MiB, far under scoped-VMEM limits on v5e/v6e/v7x.
    returns (B, action_size) float32 softmax probabilities.
    """
    w_pad, b_pad, A = fused
    B, S = x.shape

    # Pick a batch tile: small batches get one rounded-up tile, large batches
    # stream block_b rows per grid step.
    tb = block_b if B >= block_b else _round_up(B, 16)
    b_padded = pl.cdiv(B, tb) * tb
    if b_padded != B:
        x = jnp.pad(x, ((0, b_padded - B), (0, 0)))
    x = x.astype(w_pad.dtype)

    out = pl.pallas_call(
        _fused_net_kernel,
        out_shape=jax.ShapeDtypeStruct((b_padded, A_PAD), jnp.float32),
        grid=(b_padded // tb,),
        in_specs=[
            pl.BlockSpec((tb, S), lambda i: (i, 0)),       # activation stream
            pl.BlockSpec((S, A_PAD), lambda i: (0, 0)),    # weights: resident
            pl.BlockSpec((1, A_PAD), lambda i: (0, 0)),    # bias:    resident
        ],
        out_specs=pl.BlockSpec((tb, A_PAD), lambda i: (i, 0)),
        compiler_params=pltpu.CompilerParams(
            dimension_semantics=("parallel",)),            # v7x megacore
    )(x, w_pad, b_pad)

    return out[:B, :A]


def init_params(key, state_size, action_size):
    """Deterministic init mimicking nn.Linear's U(-1/sqrt(fan_in), ...)."""
    def linear(key, fan_in, fan_out):
        kw, kb = jax.random.split(key)
        bound = 1.0 / jnp.sqrt(jnp.float32(fan_in))
        w = jax.random.uniform(kw, (fan_in, fan_out), jnp.float32, -bound, bound)
        b = jax.random.uniform(kb, (1, fan_out), jnp.float32, -bound, bound)
        return w, b

    k1, k2, k3 = jax.random.split(key, 3)
    w1, b1 = linear(k1, state_size, 16)
    w2, b2 = linear(k2, 16, 16)
    w3, b3 = linear(k3, 16, action_size)
    return {"w1": w1, "b1": b1, "w2": w2, "b2": b2, "w3": w3, "b3": b3}


def reference_forward(x, params):
    h = x @ params["w1"] + params["b1"]
    h = h @ params["w2"] + params["b2"]
    logits = h @ params["w3"] + params["b3"]
    return jax.nn.softmax(logits, axis=-1)


# TODO(synk): the gym env, Categorical sampling and the optimizer loop are
# outside the nn.Module forward pass and are intentionally not implemented.

if __name__ == "__main__":
    # LunarLander-v2: observation dim = 8, action dim = 4
    STATE_SIZE = 8
    ACTION_SIZE = 4

    key = jax.random.PRNGKey(0)
    k_params, k_x1, k_x2 = jax.random.split(key, 3)
    params = init_params(k_params, STATE_SIZE, ACTION_SIZE)

    # ---- tiny batch, f32 path (single grid step) ----
    x_small = jax.random.normal(k_x1, (2, STATE_SIZE), dtype=jnp.float32)
    fused_f32 = fuse_params(params)
    probs = jax.block_until_ready(net_forward(x_small, fused_f32))
    ref = reference_forward(x_small, params)
    assert probs.shape == (2, ACTION_SIZE)
    # tolerance covers f32 fusion rounding + EUP approximate reciprocal
    assert jnp.allclose(probs, ref, atol=5e-3, rtol=5e-3)
    assert jnp.allclose(jnp.sum(probs, axis=-1), 1.0, atol=1e-2)

    # ---- larger batch, multi-step grid + bf16 MXU inputs (v6e/v7x path) ----
    x_big = jax.random.normal(k_x2, (64, STATE_SIZE), dtype=jnp.float32)
    fused_bf16 = fuse_params(params, compute_dtype=jnp.bfloat16)
    probs_bf16 = jax.block_until_ready(
        net_forward(x_big, fused_bf16, block_b=32))
    ref_big = reference_forward(x_big, params)
    assert probs_bf16.shape == (64, ACTION_SIZE)
    assert jnp.allclose(probs_bf16, ref_big, atol=3e-2, rtol=3e-2)
    assert jnp.allclose(jnp.sum(probs_bf16, axis=-1), 1.0, atol=2e-2)

    print("KERNEL_OK")
</pallas_src>

<mosaic_0001>
module attributes {stable_mosaic.version = 11 : i64} {
  func.func @_fused_net_kernel(%arg0: i32, %arg1: memref<16x8xf32, #tpu.memory_space<vmem>>, %arg2: memref<8x128xf32, #tpu.memory_space<vmem>>, %arg3: memref<1x128xf32, #tpu.memory_space<vmem>>, %arg4: memref<16x128xf32, #tpu.memory_space<vmem>>) attributes {dimension_semantics = [#tpu.dimension_semantics<parallel>], iteration_bounds = array<i64: 1>, scalar_prefetch = 0 : i64, scratch_operands = 0 : i64, tpu.core_type = #tpu.core_type<tc>, window_params = [{transform_indices = @transform_0, window_bounds = array<i64: 16, 8>}, {pipeline_mode = #tpu.pipeline_mode<synchronous>, transform_indices = @transform_1, window_bounds = array<i64: 8, 128>}, {pipeline_mode = #tpu.pipeline_mode<synchronous>, transform_indices = @transform_2, window_bounds = array<i64: 1, 128>}, {transform_indices = @transform_3, window_bounds = array<i64: 16, 128>}]} {
    %c0 = arith.constant 0 : index
    %c0_0 = arith.constant 0 : index
    %0 = vector.load %arg1[%c0, %c0_0] : memref<16x8xf32, #tpu.memory_space<vmem>>, vector<16x8xf32>
    %c0_1 = arith.constant 0 : index
    %c0_2 = arith.constant 0 : index
    %1 = vector.load %arg2[%c0_1, %c0_2] : memref<8x128xf32, #tpu.memory_space<vmem>>, vector<8x128xf32>
    %cst = arith.constant dense<0.000000e+00> : vector<16x128xf32>
    %2 = tpu.matmul %0, %1, %cst {dimension_numbers = #tpu.dot_dimension_numbers<[1], [0], [0], [1], [0, 0, 1, 1], [], []>} : vector<16x8xf32>, vector<8x128xf32>, vector<16x128xf32> -> vector<16x128xf32>
    %c0_3 = arith.constant 0 : index
    %c0_4 = arith.constant 0 : index
    %3 = vector.load %arg3[%c0_3, %c0_4] : memref<1x128xf32, #tpu.memory_space<vmem>>, vector<1x128xf32>
    %4 = vector.broadcast %3 : vector<1x128xf32> to vector<16x128xf32>
    %5 = arith.addf %2, %4 : vector<16x128xf32>
    %cst_5 = arith.constant dense<0xFF800000> : vector<16xf32>
    %6 = vector.multi_reduction <maximumf>, %5, %cst_5 [1] : vector<16x128xf32> to vector<16xf32>
    %7 = vector.shape_cast %6 : vector<16xf32> to vector<16x1xf32>
    %8 = vector.broadcast %7 : vector<16x1xf32> to vector<16x128xf32>
    %9 = arith.subf %5, %8 : vector<16x128xf32>
    %10 = math.exp %9 : vector<16x128xf32>
    %cst_6 = arith.constant dense<0.000000e+00> : vector<16xf32>
    %11 = vector.multi_reduction <add>, %10, %cst_6 [1] : vector<16x128xf32> to vector<16xf32>
    %12 = vector.shape_cast %11 : vector<16xf32> to vector<16x1xf32>
    %13 = tpu.reciprocal %12 {approx = true} : vector<16x1xf32> -> vector<16x1xf32>
    %14 = vector.broadcast %13 : vector<16x1xf32> to vector<16x128xf32>
    %15 = arith.mulf %10, %14 : vector<16x128xf32>
    %c0_7 = arith.constant 0 : index
    %c0_8 = arith.constant 0 : index
    %16 = vector.load %arg4[%c0_7, %c0_8] : memref<16x128xf32, #tpu.memory_space<vmem>>, vector<16x128xf32>
    tpu.vector_store %arg4[%c0_7, %c0_8], %15 {strides = array<i32>} : memref<16x128xf32, #tpu.memory_space<vmem>>, vector<16x128xf32>,
    return
  }
  func.func @transform_0(%arg0: i32) -> (i32, i32) {
    %c0_i32 = arith.constant 0 : i32
    %c0_i32_0 = arith.constant 0 : i32
    return %arg0, %c0_i32 : i32, i32
  }
  func.func @transform_1(%arg0: i32) -> (i32, i32) {
    %c0_i32 = arith.constant 0 : i32
    %c0_i32_0 = arith.constant 0 : i32
    %c0_i32_1 = arith.constant 0 : i32
    return %c0_i32, %c0_i32_0 : i32, i32
  }
  func.func @transform_2(%arg0: i32) -> (i32, i32) {
    %c0_i32 = arith.constant 0 : i32
    %c0_i32_0 = arith.constant 0 : i32
    %c0_i32_1 = arith.constant 0 : i32
    return %c0_i32, %c0_i32_0 : i32, i32
  }
  func.func @transform_3(%arg0: i32) -> (i32, i32) {
    %c0_i32 = arith.constant 0 : i32
    %c0_i32_0 = arith.constant 0 : i32
    return %arg0, %c0_i32 : i32, i32
  }
}

</mosaic_0001>

<llo_original>
// kernel: tpu_custom_call.1
$region0: #{tpu_custom_call.1}
  #allocation0 [shape = 'u32[]', space=smem, size = 0x4, offset = 0x4, fixed_abs, tag = 'smem constant byte address 0x4 - core index']
  #allocation1 [shape = 'u32[72,128]{1,0:T(1,128)}', space=vmem, size = 0x9000, scoped, tag = 'internal scratch']
  %s0 = inlined_call_operand.vmem [shape: f32[16,8], index: 0, kind: input, shape index: {}]
  %s1 = inlined_call_operand.vmem [shape: f32[8,128], index: 1, kind: input, shape index: {}]
  %s2 = inlined_call_operand.vmem [shape: f32[1,128], index: 2, kind: input, shape index: {}]
  %s3 = inlined_call_operand.hbm [shape: f32[16,128], index: 3, kind: output, shape index: {}]
  %s4 = sld [smem:[#allocation0]]
  $region22: #{tpu_custom_call.1} parent=0
    _
  %s6 = ssub.s32 1, %s4
  %s7 = scalar_select 0, %s6, %s4
  $region1: #{tpu_custom_call.1} parent=0
    #allocation2 [shape = 'u8[8192]{0}', space=vmem, size = 0x2000, scoped, tag = 'output window, operand 0, single buffered']
    #allocation3 [shape = 's32[1]{0}', space=sflag, size = 0x4, scoped, tag = 'scoped memory for tpu_custom_call.1']
    %8 = vsyncpa [#allocation3], 0
    // Predicated region
    $region2: #{tpu_custom_call.1} parent=1 // pred_check
      _
    $region3: #{tpu_custom_call.1} parent=1 // pred_check_branch
      %10 = sbr.rel (0) target = $region5
    $region4: #{tpu_custom_call.1} parent=1 // pred_region
      _
    $region5: #{tpu_custom_call.1} parent=1 // pred_fallthru
      _
    // Predicated region
    $region6: #{tpu_custom_call.1} parent=1 // pred_check
      _
    $region7: #{tpu_custom_call.1} parent=1 // pred_check_branch
      %12 = sbr.rel (0) target = $region9
    $region8: #{tpu_custom_call.1} parent=1 // pred_region
      _
    $region9: #{tpu_custom_call.1} parent=1 // pred_fallthru
      _
    // Predicated region
    $region10: #{tpu_custom_call.1} parent=1 // pred_check
      _
    $region11: #{tpu_custom_call.1} parent=1 // pred_check_branch
      %14 = sbr.rel (0) target = $region13
    $region12: #{tpu_custom_call.1} parent=1 // pred_region
      _
    $region13: #{tpu_custom_call.1} parent=1 // pred_fallthru
      _
    %v15 = vld [vmem:[%s0] sm:$0xff]
    %v16 = vld [vmem:[%s0 + $0x8] sm:$0xff]
    %v17 = vld [vmem:[%s1] sm:$0xff]
    %v18 = vld [vmem:[%s2] sm:$0x1]
    %v20 = vperm.slane %v18, 0
    %vm22 = vcmask 64512
    %v24 = vsel %vm22, %v15, 0
    %v27 = vsel %vm22, %v16, 0
    %29 = vmatpush.msra.mxu0 0.0
    %30 = vmatpush.msra.mxu0 0.0
    %31 = vmatpush.msra.mxu0 0.0
    %32 = vmatpush.msra.mxu0 0.0
    %33 = vmatpush.msra.mxu0 0.0
    %34 = vmatpush.msra.mxu0 0.0
    %35 = vmatpush.msra.mxu0 0.0
    %36 = vmatpush.msra.mxu0 0.0
    %37 = vmatpush.msra.mxu0 0.0
    %38 = vmatpush.msra.mxu0 0.0
    %39 = vmatpush.msra.mxu0 0.0
    %40 = vmatpush.msra.mxu0 0.0
    %41 = vmatpush.msra.mxu0 0.0
    %42 = vmatpush.msra.mxu0 0.0
    %43 = vmatpush.msra.mxu0 0.0
    %44 = vmatpush.msra.mxu0 %v17
    %45 = vmatmul.f32.gmra.mxu0 %v24
    %v46 = vpop.f32.mrf.mxu0
    %v47 = vadd.f32 %v20, %v46
    %48 = vmatmul.f32.gmra.mxu0 %v27
    %v49 = vpop.f32.mrf.mxu0
    %v50 = vadd.f32 %v20, %v49
    %51 = vdwg.mxu0
    %52 = vmax.xlane.f32.xlu0 %v47
    %v53 = vpop.xlane.xlu0 %52
    %54 = vmax.xlane.f32.xlu0 %v50
    %v55 = vpop.xlane.xlu0 %54
    %v56 = vsub.f32 %v47, %v53
    %v57 = vsub.f32 %v50, %v55
    %v58 = vmul.f32 %v56, 1.442695
    %v59 = vpow.pop %v58
    %v60 = vmul.f32 %v57, 1.442695
    %v61 = vpow.pop %v60
    %62 = vadd.xlane.f32.xlu0 %v59
    %v63 = vpop.xlane.xlu0 %62
    %64 = vadd.xlane.f32.xlu0 %v61
    %v65 = vpop.xlane.xlu0 %64
    %v66 = vrcp.pop %v63
    %v67 = vrcp.pop %v65
    %v68 = vmul.f32 %v59, %v66
    %v69 = vmul.f32 %v61, %v67
    %70 = vst [vmem:[#allocation2] sm:$0xff] %v68
    %71 = vst [vmem:[#allocation2 + $0x8] sm:$0xff] %v69
    // Predicated region
    $region14: #{tpu_custom_call.1} parent=1 // pred_check
      _
    $region15: #{tpu_custom_call.1} parent=1 // pred_check_branch
      %73 = sbr.rel (0) target = $region17
    $region16: #{tpu_custom_call.1} parent=1 // pred_region
      %75 = vsyncadd [#allocation3], 0
      %s76 = sshll.u32 [#allocation2], 4
      %s77 = int_to_ptr.vmem [resolvable:$true] %s76
      %s78 = sshll.u32 %s3, 4
      %s79 = int_to_ptr.hbm [resolvable:$true] %s78
      %84 = dma.vmem_to_hbm [thread:$0]  %s77, 256, %s79, [#allocation3], 128, 128, 8
    $region17: #{tpu_custom_call.1} parent=1 // pred_fallthru
      _
    // Predicated region
    $region18: #{tpu_custom_call.1} parent=1 // pred_check
      _
    $region19: #{tpu_custom_call.1} parent=1 // pred_check_branch
      %86 = sbr.rel (0) target = $region21
    $region20: #{tpu_custom_call.1} parent=1 // pred_region
      %88 = dma.done [#allocation3], 256
    $region21: #{tpu_custom_call.1} parent=1 // pred_fallthru
      _
    %89 = vsyncpa [#allocation3], 1

</llo_original>
